<compile_context>
chip_gen: v7x
topology: tpu7x:2x2x1
jax: 0.10.0
libtpu: 0.0.40
codegen_flags: <defaults>
</compile_context>

<pallas_src>
import jax
import jax.numpy as jnp
from jax.experimental import pallas as pl
from jax.experimental.pallas import tpu as pltpu


def _patch_embed_kernel(p_ref, w_ref, b_ref, o_ref):
    # p: (bm, K) bf16   w: (K, E) bf16   b: (1, E) f32   ->   o: (bm, E)
    acc = jnp.dot(p_ref[...], w_ref[...], preferred_element_type=jnp.float32)
    o_ref[...] = (acc + b_ref[...]).astype(o_ref.dtype)


def patch_embed(img, w_conv, b_conv, patch_size, *, block_m=512):
    """PyTorch PatchEmbed.forward: (B, Cin, H, W) -> (B, Hp*Wp, embed_dim)."""
    B, Cin, H, W = img.shape
    p = patch_size
    Hp, Wp = H // p, W // p
    E = w_conv.shape[0]
    K = Cin * p * p
    M = B * Hp * Wp

    # im2col: rows in (b, hi, wi) order (matches flatten(2).transpose(1, 2)),
    # columns in the conv's (c, dy, dx) contraction order.  Cast to bf16 first
    # so the cast + permutation is one XLA op and the patch matrix in HBM is
    # half the bytes.
    patches = img.astype(jnp.bfloat16).reshape(B, Cin, Hp, p, Wp, p)
    patches = patches.transpose(0, 2, 4, 1, 3, 5).reshape(M, K)
    w_flat = w_conv.reshape(E, K).T.astype(jnp.bfloat16)          # (K, E)
    bias = b_conv.reshape(1, E).astype(jnp.float32)

    bm = M if M < block_m else block_m      # full-dim block is always legal
    grid = (pl.cdiv(M, bm),)

    out = pl.pallas_call(
        _patch_embed_kernel,
        out_shape=jax.ShapeDtypeStruct((M, E), img.dtype),
        grid=grid,
        in_specs=[
            pl.BlockSpec((bm, K), lambda i: (i, 0)),   # streamed row tiles
            pl.BlockSpec((K, E), lambda i: (0, 0)),    # weights, resident
            pl.BlockSpec((1, E), lambda i: (0, 0)),    # bias, resident
        ],
        out_specs=pl.BlockSpec((bm, E), lambda i: (i, 0)),
        compiler_params=pltpu.CompilerParams(
            dimension_semantics=("parallel",),
            allow_input_fusion=[True, False, False],   # fold im2col into input
        ),
        cost_estimate=pl.CostEstimate(
            flops=2 * M * K * E,
            transcendentals=0,
            bytes_accessed=M * K * 2 + K * E * 2 + M * E * img.dtype.itemsize,
        ),
    )(patches, w_flat, bias)
    return out.reshape(B, Hp * Wp, E)


if __name__ == "__main__":
    # small PatchEmbed: 32x32 image, patch 8 -> 4x4=16 patches, 3 channels,
    # embed_dim 128 (multiple of 128 so output stores are lane-dense).
    B, CIN, IMG, PATCH, EMBED = 2, 3, 32, 8, 128

    key = jax.random.PRNGKey(0)
    kx, kw, kb = jax.random.split(key, 3)
    x = jax.random.normal(kx, (B, CIN, IMG, IMG), jnp.float32)        # NCHW
    w = 0.02 * jax.random.truncated_normal(
        kw, -2.0, 2.0, (EMBED, CIN, PATCH, PATCH), jnp.float32)       # OIHW
    b = 0.01 * jax.random.normal(kb, (EMBED,), jnp.float32)

    out = patch_embed(x, w, b, PATCH)
    out = jax.block_until_ready(out)

    # pure-JAX reference (f32 conv) for a tolerance check (operands are bf16
    # in the kernel, so allow a small numerical delta).
    ref = jax.lax.conv_general_dilated(
        x, w, window_strides=(PATCH, PATCH), padding="VALID",
        dimension_numbers=("NCHW", "OIHW", "NCHW"))
    ref = ref.reshape(B, EMBED, -1).transpose(0, 2, 1) + b[None, None, :]

    assert out.shape == (B, (IMG // PATCH) ** 2, EMBED)
    assert jnp.all(jnp.isfinite(out))
    max_err = float(jnp.max(jnp.abs(out - ref)))
    assert max_err < 5e-2, f"max abs err {max_err}"
    print("KERNEL_OK")
</pallas_src>

<mosaic_0001>
module attributes {stable_mosaic.version = 11 : i64} {
  func.func @_patch_embed_kernel(%arg0: i32, %arg1: memref<32x192xbf16, #tpu.memory_space<vmem>>, %arg2: memref<192x128xbf16, #tpu.memory_space<vmem>>, %arg3: memref<1x128xf32, #tpu.memory_space<vmem>>, %arg4: memref<32x128xf32, #tpu.memory_space<vmem>>) attributes {dimension_semantics = [#tpu.dimension_semantics<parallel>], iteration_bounds = array<i64: 1>, scalar_prefetch = 0 : i64, scratch_operands = 0 : i64, tpu.core_type = #tpu.core_type<tc>, window_params = [{transform_indices = @transform_0, window_bounds = array<i64: 32, 192>}, {pipeline_mode = #tpu.pipeline_mode<synchronous>, transform_indices = @transform_1, window_bounds = array<i64: 192, 128>}, {pipeline_mode = #tpu.pipeline_mode<synchronous>, transform_indices = @transform_2, window_bounds = array<i64: 1, 128>}, {transform_indices = @transform_3, window_bounds = array<i64: 32, 128>}]} {
    %c0 = arith.constant 0 : index
    %c0_0 = arith.constant 0 : index
    %0 = vector.load %arg1[%c0, %c0_0] : memref<32x192xbf16, #tpu.memory_space<vmem>>, vector<32x192xbf16>
    %c0_1 = arith.constant 0 : index
    %c0_2 = arith.constant 0 : index
    %1 = vector.load %arg2[%c0_1, %c0_2] : memref<192x128xbf16, #tpu.memory_space<vmem>>, vector<192x128xbf16>
    %cst = arith.constant dense<0.000000e+00> : vector<32x128xf32>
    %2 = tpu.matmul %0, %1, %cst {dimension_numbers = #tpu.dot_dimension_numbers<[1], [0], [0], [1], [0, 0, 1, 1], [], []>} : vector<32x192xbf16>, vector<192x128xbf16>, vector<32x128xf32> -> vector<32x128xf32>
    %c0_3 = arith.constant 0 : index
    %c0_4 = arith.constant 0 : index
    %3 = vector.load %arg3[%c0_3, %c0_4] : memref<1x128xf32, #tpu.memory_space<vmem>>, vector<1x128xf32>
    %4 = vector.broadcast %3 : vector<1x128xf32> to vector<32x128xf32>
    %5 = arith.addf %2, %4 : vector<32x128xf32>
    %c0_5 = arith.constant 0 : index
    %c0_6 = arith.constant 0 : index
    %6 = vector.load %arg4[%c0_5, %c0_6] : memref<32x128xf32, #tpu.memory_space<vmem>>, vector<32x128xf32>
    tpu.vector_store %arg4[%c0_5, %c0_6], %5 {strides = array<i32>} : memref<32x128xf32, #tpu.memory_space<vmem>>, vector<32x128xf32>,
    return
  }
  func.func @transform_0(%arg0: i32) -> (i32, i32) {
    %c0_i32 = arith.constant 0 : i32
    %c0_i32_0 = arith.constant 0 : i32
    return %arg0, %c0_i32 : i32, i32
  }
  func.func @transform_1(%arg0: i32) -> (i32, i32) {
    %c0_i32 = arith.constant 0 : i32
    %c0_i32_0 = arith.constant 0 : i32
    %c0_i32_1 = arith.constant 0 : i32
    return %c0_i32, %c0_i32_0 : i32, i32
  }
  func.func @transform_2(%arg0: i32) -> (i32, i32) {
    %c0_i32 = arith.constant 0 : i32
    %c0_i32_0 = arith.constant 0 : i32
    %c0_i32_1 = arith.constant 0 : i32
    return %c0_i32, %c0_i32_0 : i32, i32
  }
  func.func @transform_3(%arg0: i32) -> (i32, i32) {
    %c0_i32 = arith.constant 0 : i32
    %c0_i32_0 = arith.constant 0 : i32
    return %arg0, %c0_i32 : i32, i32
  }
}

</mosaic_0001>

<llo_original>
// kernel: tpu_custom_call.1
$region0: #{tpu_custom_call.1}
  #allocation0 [shape = 'u32[]', space=smem, size = 0x4, offset = 0x4, fixed_abs, tag = 'smem constant byte address 0x4 - core index']
  #allocation1 [shape = 'u32[144,128]{1,0:T(1,128)}', space=vmem, size = 0x12000, scoped, tag = 'internal scratch']
  %s0 = inlined_call_operand.hbm [shape: bf16[32,192], index: 0, kind: input, shape index: {}]
  %s1 = inlined_call_operand.hbm [shape: bf16[192,128], index: 1, kind: input, shape index: {}]
  %s2 = inlined_call_operand.vmem [shape: f32[1,128], index: 2, kind: input, shape index: {}]
  %s3 = inlined_call_operand.hbm [shape: f32[32,128], index: 3, kind: output, shape index: {}]
  %s4 = sld [smem:[#allocation0]]
  $region30: #{tpu_custom_call.1} parent=0
    _
  %s6 = ssub.s32 1, %s4
  %s7 = scalar_select 0, %s6, %s4
  $region1: #{tpu_custom_call.1} parent=0
    #allocation2 [shape = 'u8[16384]{0}', space=vmem, size = 0x4000, scoped, tag = 'input window, operand 0, single buffered']
    #allocation3 [shape = 's32[1]{0}', space=sflag, size = 0x4, scoped, tag = 'scoped memory for tpu_custom_call.1']
    #allocation4 [shape = 's32[1]{0}', space=sflag, size = 0x4, scoped, tag = 'scoped memory for tpu_custom_call.1']
    #allocation5 [shape = 'u8[49152]{0}', space=vmem, size = 0xc000, scoped, tag = 'input window, operand 1, single buffered']
    #allocation6 [shape = 's32[1]{0}', space=sflag, size = 0x4, scoped, tag = 'scoped memory for tpu_custom_call.1']
    #allocation7 [shape = 'u8[16384]{0}', space=vmem, size = 0x4000, scoped, tag = 'output window, operand 0, single buffered']
    %8 = vsyncpa [#allocation3], 0
    %9 = vsyncpa [#allocation6], 0
    %10 = vsyncpa [#allocation4], 0
    // Predicated region
    $region2: #{tpu_custom_call.1} parent=1 // pred_check
      _
    $region3: #{tpu_custom_call.1} parent=1 // pred_check_branch
      %12 = sbr.rel (0) target = $region5
    $region4: #{tpu_custom_call.1} parent=1 // pred_region
      %s14 = ssub.s32 512, 512
      %15 = vsyncadd [#allocation3], %s14
      %s16 = sshll.u32 [#allocation2], 4
      %s17 = int_to_ptr.vmem [resolvable:$true] %s16
      %22 = dma.hbm_to_vmem [thread:$0]  %s0, 512, %s17, [#allocation3], 128, 128, 8
    $region5: #{tpu_custom_call.1} parent=1 // pred_fallthru
      _
    // Predicated region
    $region6: #{tpu_custom_call.1} parent=1 // pred_check
      _
    $region7: #{tpu_custom_call.1} parent=1 // pred_check_branch
      %24 = sbr.rel (0) target = $region9
    $region8: #{tpu_custom_call.1} parent=1 // pred_region
      %s26 = ssub.s32 1536, 1536
      %27 = vsyncadd [#allocation6], %s26
      %s28 = sshll.u32 [#allocation5], 4
      %s29 = int_to_ptr.vmem [resolvable:$true] %s28
      %34 = dma.hbm_to_vmem [thread:$0]  %s1, 1536, %s29, [#allocation6], 64, 64, 4
    $region9: #{tpu_custom_call.1} parent=1 // pred_fallthru
      _
    // Predicated region
    $region10: #{tpu_custom_call.1} parent=1 // pred_check
      _
    $region11: #{tpu_custom_call.1} parent=1 // pred_check_branch
      %36 = sbr.rel (0) target = $region13
    $region12: #{tpu_custom_call.1} parent=1 // pred_region
      _
    $region13: #{tpu_custom_call.1} parent=1 // pred_fallthru
      _
    // Predicated region
    $region14: #{tpu_custom_call.1} parent=1 // pred_check
      _
    $region15: #{tpu_custom_call.1} parent=1 // pred_check_branch
      %38 = sbr.rel (0) target = $region17
    $region16: #{tpu_custom_call.1} parent=1 // pred_region
      %39 = dma.done [#allocation3], 512
    $region17: #{tpu_custom_call.1} parent=1 // pred_fallthru
      _
    // Predicated region
    $region18: #{tpu_custom_call.1} parent=1 // pred_check
      _
    $region19: #{tpu_custom_call.1} parent=1 // pred_check_branch
      %41 = sbr.rel (0) target = $region21
    $region20: #{tpu_custom_call.1} parent=1 // pred_region
      %42 = dma.done [#allocation6], 1536
    $region21: #{tpu_custom_call.1} parent=1 // pred_fallthru
      _
    %v44 = vld [vmem:[#allocation2] sm:$0xff]
    %v45 = vld [vmem:[#allocation2 + $0x8] sm:$0xff]
    %v46 = vld [vmem:[#allocation2 + $0x10] sm:$0xff]
    %v47 = vld [vmem:[#allocation2 + $0x18] sm:$0xff]
    %v48 = vld [vmem:[#allocation5] sm:$0xf]
    %v49 = vld [vmem:[#allocation5 + $0x4] sm:$0xf]
    %v50 = vld [vmem:[#allocation5 + $0x8] sm:$0xf]
    %v51 = vld [vmem:[#allocation5 + $0xc] sm:$0xf]
    %v52 = vld [vmem:[#allocation5 + $0x10] sm:$0xf]
    %v53 = vld [vmem:[#allocation5 + $0x14] sm:$0xf]
    %v54 = vld [vmem:[#allocation5 + $0x18] sm:$0xf]
    %v55 = vld [vmem:[#allocation5 + $0x1c] sm:$0xf]
    %v56 = vld [vmem:[#allocation5 + $0x20] sm:$0xf]
    %v57 = vld [vmem:[#allocation5 + $0x24] sm:$0xf]
    %v58 = vld [vmem:[#allocation5 + $0x28] sm:$0xf]
    %v59 = vld [vmem:[#allocation5 + $0x2c] sm:$0xf]
    %v60 = vld [vmem:[#allocation5 + $0x30] sm:$0xf]
    %v61 = vld [vmem:[#allocation5 + $0x34] sm:$0xf]
    %v62 = vld [vmem:[#allocation5 + $0x38] sm:$0xf]
    %v63 = vld [vmem:[#allocation5 + $0x3c] sm:$0xf]
    %v64 = vld [vmem:[#allocation5 + $0x40] sm:$0xf]
    %v65 = vld [vmem:[#allocation5 + $0x44] sm:$0xf]
    %v66 = vld [vmem:[#allocation5 + $0x48] sm:$0xf]
    %v67 = vld [vmem:[#allocation5 + $0x4c] sm:$0xf]
    %v68 = vld [vmem:[#allocation5 + $0x50] sm:$0xf]
    %v69 = vld [vmem:[#allocation5 + $0x54] sm:$0xf]
    %v70 = vld [vmem:[#allocation5 + $0x58] sm:$0xf]
    %v71 = vld [vmem:[#allocation5 + $0x5c] sm:$0xf]
    %v72 = vld [vmem:[%s2] sm:$0x1]
    %v74 = vlaneseq
    %v75 = vshrl.u32 %v74, 7
    %v76 = vsub.s32 0, %v75
    %v77 = vrot.slane %v72, %v76
    %v83 = vunpack.c.l.b16 %v44
    %v84 = vunpack.c.h.b16 %v44
    %v85 = vunpack.c.l.b16 %v45
    %v86 = vunpack.c.h.b16 %v45
    %v87 = vunpack.c.l.b16 %v46
    %v88 = vunpack.c.h.b16 %v46
    %v89 = vunpack.c.l.b16 %v47
    %v90 = vunpack.c.h.b16 %v47
    %v91 = vpack.c.b16 %v85, %v83
    %v92 = vpack.c.b16 %v86, %v84
    %v93 = vpack.c.b16 %v89, %v87
    %v94 = vpack.c.b16 %v90, %v88
    %v121 = vunpack.c.l.b16 %v48
    %v122 = vunpack.c.l.b16 %v49
    %v123 = vunpack.c.l.b16 %v50
    %v124 = vunpack.c.l.b16 %v51
    %v125 = vunpack.c.l.b16 %v52
    %v126 = vunpack.c.l.b16 %v53
    %v127 = vunpack.c.l.b16 %v54
    %v128 = vunpack.c.l.b16 %v55
    %v129 = vunpack.c.l.b16 %v56
    %v130 = vunpack.c.l.b16 %v57
    %v131 = vunpack.c.l.b16 %v58
    %v132 = vunpack.c.l.b16 %v59
    %v133 = vunpack.c.l.b16 %v60
    %v134 = vunpack.c.l.b16 %v61
    %v135 = vunpack.c.l.b16 %v62
    %v136 = vunpack.c.l.b16 %v63
    %v137 = vunpack.c.l.b16 %v64
    %v138 = vunpack.c.l.b16 %v65
    %v139 = vunpack.c.l.b16 %v66
    %v140 = vunpack.c.l.b16 %v67
    %v141 = vunpack.c.l.b16 %v68
    %v142 = vunpack.c.l.b16 %v69
    %v143 = vunpack.c.l.b16 %v70
    %v144 = vunpack.c.l.b16 %v71
    %v145 = vpack.c.b16 %v122, %v121
    %v146 = vpack.c.b16 %v124, %v123
    %v147 = vpack.c.b16 %v126, %v125
    %v148 = vpack.c.b16 %v128, %v127
    %v149 = vpack.c.b16 %v130, %v129
    %v150 = vpack.c.b16 %v132, %v131
    %v151 = vpack.c.b16 %v134, %v133
    %v152 = vpack.c.b16 %v136, %v135
    %v153 = vpack.c.b16 %v138, %v137
    %v154 = vpack.c.b16 %v140, %v139
    %v155 = vpack.c.b16 %v142, %v141
    %v156 = vpack.c.b16 %v144, %v143
    %vm169 = vcmask 523264
    %v171 = vsel %vm169, %v92, 0
    %v174 = vsel %vm169, %v94, 0
    %176 = vmatprep.subr.bf16.mxu0 0
    %177 = vmatpush1.bf16.msra.mxu0 %v145
    %178 = vmatprep.subr.bf16.mxu0 0
    %179 = vmatpush1.bf16.msra.mxu0 %v146
    %180 = vmatprep.subr.bf16.mxu0 0
    %181 = vmatpush1.bf16.msra.mxu0 %v147
    %182 = vmatprep.subr.bf16.mxu0 0
    %183 = vmatpush1.bf16.msra.mxu0 %v148
    %184 = vmatprep.subr.bf16.mxu0 0
    %185 = vmatpush1.bf16.msra.mxu0 %v149
    %186 = vmatprep.subr.bf16.mxu0 0
    %187 = vmatpush1.bf16.msra.mxu0 %v150
    %188 = vmatprep.subr.bf16.mxu0 0
    %189 = vmatpush1.bf16.msra.mxu0 %v151
    %190 = vmatprep.subr.bf16.mxu0 0
    %191 = vmatpush1.bf16.msra.mxu0 %v152
    %192 = vmatprep.subr.bf16.mxu0 0
    %193 = vmatpush1.bf16.msra.mxu0 %v153
    %194 = vmatprep.subr.bf16.mxu0 0
    %195 = vmatpush1.bf16.msra.mxu0 %v154
    %196 = vmatprep.subr.bf16.mxu0 0
    %197 = vmatpush1.bf16.msra.mxu0 %v155
    %198 = vmatprep.subr.bf16.mxu0 0
    %199 = vmatpush1.bf16.msra.mxu0 %v156
    %200 = vmatprep.subr.bf16.mxu0 0
    %201 = vmatpush1.bf16.msra.mxu0 0
    %202 = vmatprep.subr.bf16.mxu0 0
    %203 = vmatpush1.bf16.msra.mxu0 0
    %204 = vmatprep.subr.bf16.mxu0 0
    %205 = vmatpush1.bf16.msra.mxu0 0
    %206 = vmatprep.subr.bf16.mxu0 0
    %207 = vmatpush1.bf16.msra.mxu0 0
    %208 = vmatprep.mubr.bf16.mxu0 %v171
    %209 = vmatmul.mubr.bf16.gmra.mrb[0].mxu0 %v91
    %v210 = vpop.f32.mrb[0].mxu0
    %v211 = vadd.f32 %v77, %v210
    %v212 = vpop.f32.mrb[0].mxu0
    %v213 = vpop.f32.mrb[0].mxu0
    %v214 = vadd.f32 %v77, %v213
    %v215 = vpop.f32.mrb[0].mxu0
    %216 = vmatprep.mubr.bf16.mxu0 %v174
    %217 = vmatmul.mubr.bf16.gmra.mrb[0].mxu0 %v93
    %v218 = vpop.f32.mrb[0].mxu0
    %v219 = vadd.f32 %v77, %v218
    %v220 = vpop.f32.mrb[0].mxu0
    %v221 = vpop.f32.mrb[0].mxu0
    %v222 = vadd.f32 %v77, %v221
    %v223 = vpop.f32.mrb[0].mxu0
    %224 = vdwg.mxu0
    %225 = vst [vmem:[#allocation7] sm:$0xff] %v211
    %226 = vst [vmem:[#allocation7 + $0x8] sm:$0xff] %v214
    %227 = vst [vmem:[#allocation7 + $0x10] sm:$0xff] %v219
    %228 = vst [vmem:[#allocation7 + $0x18] sm:$0xff] %v222
    // Predicated region
    $region22: #{tpu_custom_call.1} parent=1 // pred_check
      _
    $region23: #{tpu_custom_call.1} parent=1 // pred_check_branch
      %230 = sbr.rel (0) target = $region25
    $region24: #{tpu_custom_call.1} parent=1 // pred_region
      %s232 = ssub.s32 512, 512
      %233 = vsyncadd [#allocation4], %s232
      %s234 = sshll.u32 [#allocation7], 4
      %s235 = int_to_ptr.vmem [resolvable:$true] %s234
      %240 = dma.vmem_to_hbm [thread:$0]  %s235, 512, %s3, [#allocation4], 128, 128, 8
    $region25: #{tpu_custom_call.1} parent=1 // pred_fallthru
      _
    // Predicated region
    $region26: #{tpu_custom_call.1} parent=1 // pred_check
      _
    $region27: #{tpu_custom_call.1} parent=1 // pred_check_branch
      %242 = sbr.rel (0) target = $region29
    $region28: #{tpu_custom_call.1} parent=1 // pred_region
      %243 = dma.done [#allocation4], 512
    $region29: #{tpu_custom_call.1} parent=1 // pred_fallthru
      _
    %244 = vsyncpa [#allocation3], 1
    %245 = vsyncpa [#allocation6], 1
    %246 = vsyncpa [#allocation4], 1

</llo_original>
